<compile_context>
chip_gen: v7x
topology: tpu7x:2x2x1
jax: 0.10.0
libtpu: 0.0.40
codegen_flags: <defaults>
</compile_context>

<pallas_src>
import math

import numpy as np
import jax
import jax.numpy as jnp
from jax import lax
from jax.experimental import pallas as pl
from jax.experimental.pallas import tpu as pltpu


# ---------------------------------------------------------------------------
# Bounded-range sin: arguments are known to be modest (<= n + pi/2), so a
# single Cody-Waite reduction + short odd polynomial is enough.
# ---------------------------------------------------------------------------
_INV_2PI = 0.15915494309189535
_2PI_HI = 6.28125                       # exactly representable in f32 (201/32)
_2PI_LO = 1.9353071795864769e-03        # 2*pi - 6.28125
_PI = math.pi
_HALF_PI = math.pi / 2.0
_S3 = -1.0 / 6.0
_S5 = 1.0 / 120.0
_S7 = -1.0 / 5040.0
_S9 = 1.0 / 362880.0
_S11 = -1.0 / 39916800.0
_S13 = 1.0 / 6227020800.0


def _bounded_sin(x):
    """sin(x) for moderate |x| (poly error ~1e-9, reduction error ~ulp(x))."""
    k = jnp.floor(x * _INV_2PI + 0.5)          # round-to-nearest (floor is cheap & safe)
    r = x - k * _2PI_HI
    r = r - k * _2PI_LO                        # r in ~[-pi, pi]
    r = jnp.where(r > _HALF_PI, _PI - r, r)    # fold to [-pi/2, pi/2]
    r = jnp.where(r < -_HALF_PI, -_PI - r, r)
    r2 = r * r
    p = _S13
    p = p * r2 + _S11
    p = p * r2 + _S9
    p = p * r2 + _S7
    p = p * r2 + _S5
    p = p * r2 + _S3
    return r + r * (r2 * p)


def _seq_pos_embed_kernel(c_ref, o_ref):
    # o_ref block: (tile_rows, width); c_ref: (2, width) = [A; B] lane constants.
    rows = o_ref.shape[0]
    j = pl.program_id(0)
    a = c_ref[0:1, :]                                           # (1, width)
    # Fold the grid-step row offset once per step (scalar * vector + vector).
    b_tile = c_ref[1:2, :] + (j * rows).astype(jnp.float32) * a  # (1, width)
    # Column-shaped row index; broadcast happens inside the fused elementwise map.
    row = lax.broadcasted_iota(jnp.int32, (rows, 1), 0).astype(jnp.float32)
    o_ref[...] = _bounded_sin(row * a + b_tile).astype(o_ref.dtype)


def _pick_tile_rows(row_bytes, target_bytes=8 << 20):
    """Largest multiple-of-8 row tile whose output block stays <= target_bytes."""
    return max(8, (target_bytes // row_bytes) // 8 * 8)


def _host_table(n, feats, temperature):
    """float64 ground-truth table, cast to f32 (also the tiny-table fast path)."""
    half = feats // 2
    embed = np.arange(1, n + 1, dtype=np.float64)[:, None]
    k = np.arange(half, dtype=np.float64)
    inv = 1.0 / (float(temperature) ** (2.0 * k / feats))
    args = embed * inv[None, :]
    return np.concatenate([np.sin(args), np.cos(args)], axis=1).astype(np.float32)


def seq_position_embedding_sine(x, num_pos_feats=64, temperature=10000,
                                normalize=False, scale=None,
                                out_dtype=jnp.float32, use_kernel=None):
    """Pallas equivalent of SeqPositionEmbeddingSine.forward(x).

    Returns (b, n, num_pos_feats). The result is batch-invariant; the batch
    dim is produced by broadcast_to, which fuses (stays lazy) under jit.
    Note: for very large n the f32 phase accumulation (row*A + B) drifts by
    ~ulp(n) on the highest-frequency lanes, same order as torch's own f32 path.
    """
    if scale is not None and normalize is False:
        raise ValueError("normalize should be True if scale is passed")
    if normalize:
        # TODO(synk): the PyTorch normalize branch indexes the 2-D `embed`
        # tensor with three indices (embed[:, -1:, :]) and would raise at
        # runtime upstream; not implemented here.
        raise NotImplementedError("normalize=True path is buggy upstream")
    if num_pos_feats % 2 != 0:
        raise ValueError("num_pos_feats must be even")

    b, n = int(x.shape[0]), int(x.shape[1])
    feats = int(num_pos_feats)
    half = feats // 2
    out_itemsize = jnp.dtype(out_dtype).itemsize

    if use_kernel is None:
        # Tiny tables: the pallas_call fixed cost dominates; use a trace-time constant.
        use_kernel = n * feats * out_itemsize >= (1 << 20)
    if not use_kernel:
        pos = jnp.asarray(_host_table(n, feats, temperature)).astype(out_dtype)
        return jnp.broadcast_to(pos[None, :, :], (b, n, feats))

    # ---- packing: p sequence rows per stored row, width = p*F multiple of 128,
    #      widened so the stored slab is 512-1024 lanes (fewer store rows / DMAs).
    base_p = 128 // math.gcd(feats, 128)
    w0 = base_p * feats
    mult = max(1, -(-512 // w0))            # ceil(512 / w0)
    p = base_p * mult
    width = p * feats

    # ---- host-side per-lane constants (float64 -> one float32 rounding):
    #   lane l: packed sub-row s = l // feats, feature f = l % feats
    #   inv[f]   = 1 / T**(2*(f mod half)/F);   phase = 0 (sin half) or pi/2 (cos half)
    #   out[row, l] = sin((row*p + s + 1)*inv + phase) = sin(row*A[l] + B[l])
    k = np.arange(half, dtype=np.float64)
    inv_half = 1.0 / (float(temperature) ** (2.0 * k / feats))
    inv_lane = np.concatenate([inv_half, inv_half])                  # (feats,)
    phase_lane = np.concatenate([np.zeros(half), np.full(half, np.pi / 2.0)])
    sub = np.repeat(np.arange(p, dtype=np.float64), feats)           # (width,)
    inv_w = np.tile(inv_lane, p)
    ph_w = np.tile(phase_lane, p)
    a_row = p * inv_w
    b_row = (sub + 1.0) * inv_w + ph_w
    c_const = np.stack([a_row, b_row]).astype(np.float32)            # (2, width)

    # ---- tiling: ~8 MiB output blocks, but always >= 2 grid steps when there
    #      are >= 16 packed rows so v7x's two TensorCores both get work.
    rows = -(-n // p)                                 # packed rows needed
    row_bytes = width * out_itemsize
    tile_rows = _pick_tile_rows(row_bytes)
    if rows >= 16:
        half_rows = -(-rows // 2)
        tile_rows = min(tile_rows, -(-half_rows // 8) * 8)
    if tile_rows >= rows:
        tile_rows = rows                              # single block == full array
        num_tiles = 1
    else:
        num_tiles = -(-rows // tile_rows)
    rows_padded = num_tiles * tile_rows               # padded rows sliced away below

    block_bytes = tile_rows * width * out_itemsize
    # double-buffered output block + constants + generous internal headroom
    vmem_limit = max(3 * block_bytes + 4 * width * 4 + (2 << 20), 16 << 20)

    packed = pl.pallas_call(
        _seq_pos_embed_kernel,
        out_shape=jax.ShapeDtypeStruct((rows_padded, width), out_dtype),
        grid=(num_tiles,),
        in_specs=[pl.BlockSpec((2, width), lambda j: (0, 0))],
        out_specs=pl.BlockSpec((tile_rows, width), lambda j: (j, 0)),
        compiler_params=pltpu.CompilerParams(
            dimension_semantics=("parallel",),
            vmem_limit_bytes=int(vmem_limit)),
    )(jnp.asarray(c_const))

    pos = packed.reshape(rows_padded * p, feats)[:n]   # contiguous un-pack + trim
    # Batch-invariant result: broadcast (lazy under jit) instead of recomputing.
    return jnp.broadcast_to(pos[None, :, :], (b, n, feats))


def _reference(x, num_pos_feats=64, temperature=10000):
    """Pure-jnp reference mirroring the PyTorch code line-by-line."""
    b, n = x.shape[0], x.shape[1]
    not_mask = jnp.ones((b, n), jnp.float32)
    embed = jnp.cumsum(not_mask, axis=1)
    dim_t = jnp.arange(num_pos_feats, dtype=jnp.float32)
    dim_t = temperature ** (2.0 * (dim_t // 2) / num_pos_feats)
    pos = embed[:, :, None] / dim_t
    pos = jnp.concatenate(
        [jnp.sin(pos[:, :, 0::2]), jnp.cos(pos[:, :, 1::2])], axis=-1)
    return pos


if __name__ == "__main__":
    key = jax.random.PRNGKey(0)
    k1, k2, k3 = jax.random.split(key, 3)

    # x: (batch=2, seq=8, channels=32); only its shape matters to the module.
    x = jax.random.normal(k1, (2, 8, 32), dtype=jnp.float32)
    out = jax.block_until_ready(
        seq_position_embedding_sine(x, num_pos_feats=64, temperature=10000,
                                    use_kernel=True))
    ref = _reference(x, num_pos_feats=64, temperature=10000)
    assert out.shape == (2, 8, 64), out.shape
    assert jnp.allclose(out, ref, atol=1e-5, rtol=1e-5), "mismatch vs reference"

    # Odd sequence length + F=32 exercises row padding and the widened packing.
    x2 = jax.random.normal(k2, (1, 7, 16), dtype=jnp.float32)
    out2 = jax.block_until_ready(
        seq_position_embedding_sine(x2, num_pos_feats=32, temperature=10000,
                                    use_kernel=True))
    ref2 = _reference(x2, num_pos_feats=32, temperature=10000)
    assert out2.shape == (1, 7, 32), out2.shape
    assert jnp.allclose(out2, ref2, atol=1e-5, rtol=1e-5), "mismatch (padded)"

    # Longer sequence exercises the multi-tile (>= 2 grid steps) path;
    # compare against the float64 ground truth with an f32-phase tolerance.
    x3 = jnp.zeros((1, 2048, 8), dtype=jnp.float32)
    out3 = jax.block_until_ready(
        seq_position_embedding_sine(x3, num_pos_feats=64, temperature=10000,
                                    use_kernel=True))
    ref3 = _host_table(2048, 64, 10000)
    assert out3.shape == (1, 2048, 64), out3.shape
    assert jnp.allclose(out3[0], ref3, atol=2e-3, rtol=0), "mismatch (multi-tile)"

    # bf16 output option (compute in f32, cast at the store).
    out_bf16 = jax.block_until_ready(
        seq_position_embedding_sine(x, num_pos_feats=64, temperature=10000,
                                    out_dtype=jnp.bfloat16, use_kernel=True))
    assert jnp.allclose(out_bf16.astype(jnp.float32), ref, atol=1e-2), "bf16 mismatch"

    # Tiny-table auto dispatch (constant fast path, no kernel launch).
    out_const = seq_position_embedding_sine(x, num_pos_feats=64, temperature=10000)
    assert jnp.allclose(out_const, ref, atol=1e-5, rtol=1e-5), "mismatch (const path)"

    print("KERNEL_OK")
</pallas_src>

<mosaic_0001>
module attributes {stable_mosaic.version = 11 : i64} {
  func.func @_seq_pos_embed_kernel(%arg0: i32, %arg1: memref<2x512xf32, #tpu.memory_space<vmem>>, %arg2: memref<1x512xf32, #tpu.memory_space<vmem>>) attributes {dimension_semantics = [#tpu.dimension_semantics<parallel>], iteration_bounds = array<i64: 1>, scalar_prefetch = 0 : i64, scratch_operands = 0 : i64, tpu.core_type = #tpu.core_type<tc>, window_params = [{pipeline_mode = #tpu.pipeline_mode<synchronous>, transform_indices = @transform_0, window_bounds = array<i64: 2, 512>}, {transform_indices = @transform_1, window_bounds = array<i64: 1, 512>}]} {
    %c0 = arith.constant 0 : index
    %c0_0 = arith.constant 0 : index
    %0 = vector.load %arg1[%c0, %c0_0] : memref<2x512xf32, #tpu.memory_space<vmem>>, vector<1x512xf32>
    %c1 = arith.constant 1 : index
    %c0_1 = arith.constant 0 : index
    %1 = vector.load %arg1[%c1, %c0_1] : memref<2x512xf32, #tpu.memory_space<vmem>>, vector<1x512xf32>
    %c1_i32 = arith.constant 1 : i32
    %2 = arith.muli %arg0, %c1_i32 : i32
    %3 = arith.sitofp %2 : i32 to f32
    %4 = vector.broadcast %3 : f32 to vector<1x512xf32>
    %5 = arith.mulf %4, %0 : vector<1x512xf32>
    %6 = arith.addf %1, %5 : vector<1x512xf32>
    %7 = tpu.iota {dimensions = array<i32: 0>} : vector<1x1xi32>
    %8 = arith.sitofp %7 : vector<1x1xi32> to vector<1x1xf32>
    %9 = vector.broadcast %8 : vector<1x1xf32> to vector<1x512xf32>
    %10 = arith.mulf %9, %0 : vector<1x512xf32>
    %11 = arith.addf %10, %6 : vector<1x512xf32>
    %cst = arith.constant 0.159154937 : f32
    %12 = vector.broadcast %cst : f32 to vector<1x512xf32>
    %13 = arith.mulf %11, %12 : vector<1x512xf32>
    %cst_2 = arith.constant 5.000000e-01 : f32
    %14 = vector.broadcast %cst_2 : f32 to vector<1x512xf32>
    %15 = arith.addf %13, %14 : vector<1x512xf32>
    %16 = math.floor %15 : vector<1x512xf32>
    %cst_3 = arith.constant 6.281250e+00 : f32
    %17 = vector.broadcast %cst_3 : f32 to vector<1x512xf32>
    %18 = arith.mulf %16, %17 : vector<1x512xf32>
    %19 = arith.subf %11, %18 : vector<1x512xf32>
    %cst_4 = arith.constant 0.00193530717 : f32
    %20 = vector.broadcast %cst_4 : f32 to vector<1x512xf32>
    %21 = arith.mulf %16, %20 : vector<1x512xf32>
    %22 = arith.subf %19, %21 : vector<1x512xf32>
    %cst_5 = arith.constant 1.57079637 : f32
    %23 = vector.broadcast %cst_5 : f32 to vector<1x512xf32>
    %24 = arith.cmpf ogt, %22, %23 : vector<1x512xf32>
    %cst_6 = arith.constant 3.14159274 : f32
    %25 = vector.broadcast %cst_6 : f32 to vector<1x512xf32>
    %26 = arith.subf %25, %22 : vector<1x512xf32>
    %27 = arith.select %24, %26, %22 : vector<1x512xi1>, vector<1x512xf32>
    %cst_7 = arith.constant -1.57079637 : f32
    %28 = vector.broadcast %cst_7 : f32 to vector<1x512xf32>
    %29 = arith.cmpf olt, %27, %28 : vector<1x512xf32>
    %cst_8 = arith.constant -3.14159274 : f32
    %30 = vector.broadcast %cst_8 : f32 to vector<1x512xf32>
    %31 = arith.subf %30, %27 : vector<1x512xf32>
    %32 = arith.select %29, %31, %27 : vector<1x512xi1>, vector<1x512xf32>
    %33 = arith.mulf %32, %32 : vector<1x512xf32>
    %cst_9 = arith.constant 1.60590444E-10 : f32
    %34 = vector.broadcast %cst_9 : f32 to vector<1x512xf32>
    %35 = arith.mulf %34, %33 : vector<1x512xf32>
    %cst_10 = arith.constant -2.50521079E-8 : f32
    %36 = vector.broadcast %cst_10 : f32 to vector<1x512xf32>
    %37 = arith.addf %35, %36 : vector<1x512xf32>
    %38 = arith.mulf %37, %33 : vector<1x512xf32>
    %cst_11 = arith.constant 2.75573188E-6 : f32
    %39 = vector.broadcast %cst_11 : f32 to vector<1x512xf32>
    %40 = arith.addf %38, %39 : vector<1x512xf32>
    %41 = arith.mulf %40, %33 : vector<1x512xf32>
    %cst_12 = arith.constant -1.98412701E-4 : f32
    %42 = vector.broadcast %cst_12 : f32 to vector<1x512xf32>
    %43 = arith.addf %41, %42 : vector<1x512xf32>
    %44 = arith.mulf %43, %33 : vector<1x512xf32>
    %cst_13 = arith.constant 0.00833333377 : f32
    %45 = vector.broadcast %cst_13 : f32 to vector<1x512xf32>
    %46 = arith.addf %44, %45 : vector<1x512xf32>
    %47 = arith.mulf %46, %33 : vector<1x512xf32>
    %cst_14 = arith.constant -0.166666672 : f32
    %48 = vector.broadcast %cst_14 : f32 to vector<1x512xf32>
    %49 = arith.addf %47, %48 : vector<1x512xf32>
    %50 = arith.mulf %33, %49 : vector<1x512xf32>
    %51 = arith.mulf %32, %50 : vector<1x512xf32>
    %52 = arith.addf %32, %51 : vector<1x512xf32>
    %c0_15 = arith.constant 0 : index
    %c0_16 = arith.constant 0 : index
    %53 = vector.load %arg2[%c0_15, %c0_16] : memref<1x512xf32, #tpu.memory_space<vmem>>, vector<1x512xf32>
    tpu.vector_store %arg2[%c0_15, %c0_16], %52 {strides = array<i32>} : memref<1x512xf32, #tpu.memory_space<vmem>>, vector<1x512xf32>,
    return
  }
  func.func @transform_0(%arg0: i32) -> (i32, i32) {
    %c0_i32 = arith.constant 0 : i32
    %c0_i32_0 = arith.constant 0 : i32
    %c0_i32_1 = arith.constant 0 : i32
    return %c0_i32, %c0_i32_0 : i32, i32
  }
  func.func @transform_1(%arg0: i32) -> (i32, i32) {
    %c0_i32 = arith.constant 0 : i32
    %c0_i32_0 = arith.constant 0 : i32
    return %arg0, %c0_i32 : i32, i32
  }
}

</mosaic_0001>

<llo_original>
// kernel: tpu_custom_call.1
$region0: #{tpu_custom_call.1}
  #allocation0 [shape = 'u32[]', space=smem, size = 0x4, offset = 0x4, fixed_abs, tag = 'smem constant byte address 0x4 - core index']
  #allocation1 [shape = 'u32[144,128]{1,0:T(1,128)}', space=vmem, size = 0x12000, scoped, tag = 'internal scratch']
  %s0 = inlined_call_operand.hbm [shape: f32[2,512], index: 0, kind: input, shape index: {}]
  %s1 = inlined_call_operand.hbm [shape: f32[1,512], index: 1, kind: output, shape index: {}]
  %s2 = sld [smem:[#allocation0]]
  $region18: #{tpu_custom_call.1} parent=0
    _
  %s4 = ssub.s32 1, %s2
  %s5 = scalar_select 0, %s4, %s2
  $region1: #{tpu_custom_call.1} parent=0
    #allocation2 [shape = 'u8[4096]{0}', space=vmem, size = 0x1000, scoped, tag = 'input window, operand 0, single buffered']
    #allocation3 [shape = 's32[1]{0}', space=sflag, size = 0x4, scoped, tag = 'scoped memory for tpu_custom_call.1']
    #allocation4 [shape = 's32[1]{0}', space=sflag, size = 0x4, scoped, tag = 'scoped memory for tpu_custom_call.1']
    #allocation5 [shape = 'u8[2048]{0}', space=vmem, size = 0x800, scoped, tag = 'output window, operand 0, single buffered']
    %6 = vsyncpa [#allocation3], 0
    %7 = vsyncpa [#allocation4], 0
    // Predicated region
    $region2: #{tpu_custom_call.1} parent=1 // pred_check
      _
    $region3: #{tpu_custom_call.1} parent=1 // pred_check_branch
      %9 = sbr.rel (0) target = $region5
    $region4: #{tpu_custom_call.1} parent=1 // pred_region
      %s11 = ssub.s32 128, 128
      %12 = vsyncadd [#allocation3], %s11
      %s14 = sshll.u32 [#allocation2], 4
      %s15 = int_to_ptr.vmem [resolvable:$true] %s14
      %17 = dma.hbm_to_vmem [thread:$0]  %s0, 128, %s15, [#allocation3]
    $region5: #{tpu_custom_call.1} parent=1 // pred_fallthru
      _
    // Predicated region
    $region6: #{tpu_custom_call.1} parent=1 // pred_check
      _
    $region7: #{tpu_custom_call.1} parent=1 // pred_check_branch
      %19 = sbr.rel (0) target = $region9
    $region8: #{tpu_custom_call.1} parent=1 // pred_region
      %20 = dma.done [#allocation3], 128
    $region9: #{tpu_custom_call.1} parent=1 // pred_fallthru
      _
    %v21 = vld [vmem:[#allocation2] ss:$2 sm:$0xf]
    %s22 = scalar_lea.vmem [#allocation2], 1
    %v23 = vld [vmem:[%s22] ss:$2 sm:$0xf]
    %s24 = scvt.s32.f32 0
    %v25 = vstv %s24
    %v26 = vmul.f32 %v25, %v21
    %v27 = vadd.f32 %v23, %v26
    %v28 = vlaneseq
    %v29 = vshrl.u32 %v28, 7
    %v30 = vcvt.s32.f32 %v29
    %v32 = vlaneseq
    %v33 = vshrl.u32 %v32, 7
    %v34 = vsub.s32 0, %v33
    %v35 = vrot.slane %v21, %v34
    %v36 = vlaneseq
    %v37 = vshrl.u32 %v36, 7
    %v38 = vsub.s32 1, %v37
    %v39 = vrot.slane %v21, %v38
    %v40 = vlaneseq
    %v41 = vshrl.u32 %v40, 7
    %v42 = vsub.s32 2, %v41
    %v43 = vrot.slane %v21, %v42
    %v44 = vlaneseq
    %v45 = vshrl.u32 %v44, 7
    %v46 = vsub.s32 3, %v45
    %v47 = vrot.slane %v21, %v46
    %v52 = vmul.f32 %v30, %v35
    %v53 = vmul.f32 %v30, %v39
    %v54 = vmul.f32 %v30, %v43
    %v55 = vmul.f32 %v30, %v47
    %v57 = vlaneseq
    %v58 = vshrl.u32 %v57, 7
    %v59 = vsub.s32 0, %v58
    %v60 = vrot.slane %v27, %v59
    %v61 = vlaneseq
    %v62 = vshrl.u32 %v61, 7
    %v63 = vsub.s32 1, %v62
    %v64 = vrot.slane %v27, %v63
    %v65 = vlaneseq
    %v66 = vshrl.u32 %v65, 7
    %v67 = vsub.s32 2, %v66
    %v68 = vrot.slane %v27, %v67
    %v69 = vlaneseq
    %v70 = vshrl.u32 %v69, 7
    %v71 = vsub.s32 3, %v70
    %v72 = vrot.slane %v27, %v71
    %v77 = vadd.f32 %v52, %v60
    %v78 = vadd.f32 %v53, %v64
    %v79 = vadd.f32 %v54, %v68
    %v80 = vadd.f32 %v55, %v72
    %v81 = vmul.f32 %v77, 0.15915494
    %v82 = vmul.f32 %v78, 0.15915494
    %v83 = vmul.f32 %v79, 0.15915494
    %v84 = vmul.f32 %v80, 0.15915494
    %v85 = vadd.f32 %v81, 0.5
    %v86 = vadd.f32 %v82, 0.5
    %v87 = vadd.f32 %v83, 0.5
    %v88 = vadd.f32 %v84, 0.5
    %v89 = vfloor.f32 %v85
    %v90 = vfloor.f32 %v86
    %v91 = vfloor.f32 %v87
    %v92 = vfloor.f32 %v88
    %v93 = vmul.f32 %v89, 6.28125
    %v94 = vmul.f32 %v90, 6.28125
    %v95 = vmul.f32 %v91, 6.28125
    %v96 = vmul.f32 %v92, 6.28125
    %v97 = vsub.f32 %v77, %v93
    %v98 = vsub.f32 %v78, %v94
    %v99 = vsub.f32 %v79, %v95
    %v100 = vsub.f32 %v80, %v96
    %v101 = vmul.f32 %v89, 0.0019353072
    %v102 = vmul.f32 %v90, 0.0019353072
    %v103 = vmul.f32 %v91, 0.0019353072
    %v104 = vmul.f32 %v92, 0.0019353072
    %v105 = vsub.f32 %v97, %v101
    %v106 = vsub.f32 %v98, %v102
    %v107 = vsub.f32 %v99, %v103
    %v108 = vsub.f32 %v100, %v104
    %vm109 = vcmp.gt.f32.partialorder %v105, 1.5707964
    %vm110 = vcmp.gt.f32.partialorder %v106, 1.5707964
    %vm111 = vcmp.gt.f32.partialorder %v107, 1.5707964
    %vm112 = vcmp.gt.f32.partialorder %v108, 1.5707964
    %v113 = vsub.f32 3.1415927, %v105
    %v114 = vsub.f32 3.1415927, %v106
    %v115 = vsub.f32 3.1415927, %v107
    %v116 = vsub.f32 3.1415927, %v108
    %v117 = vsel %vm109, %v113, %v105
    %v118 = vsel %vm110, %v114, %v106
    %v119 = vsel %vm111, %v115, %v107
    %v120 = vsel %vm112, %v116, %v108
    %vm121 = vcmp.lt.f32.partialorder %v117, -1.5707964
    %vm122 = vcmp.lt.f32.partialorder %v118, -1.5707964
    %vm123 = vcmp.lt.f32.partialorder %v119, -1.5707964
    %vm124 = vcmp.lt.f32.partialorder %v120, -1.5707964
    %v125 = vsub.f32 -3.1415927, %v117
    %v126 = vsub.f32 -3.1415927, %v118
    %v127 = vsub.f32 -3.1415927, %v119
    %v128 = vsub.f32 -3.1415927, %v120
    %v129 = vsel %vm121, %v125, %v117
    %v130 = vsel %vm122, %v126, %v118
    %v131 = vsel %vm123, %v127, %v119
    %v132 = vsel %vm124, %v128, %v120
    %v133 = vmul.f32 %v129, %v129
    %v134 = vmul.f32 %v130, %v130
    %v135 = vmul.f32 %v131, %v131
    %v136 = vmul.f32 %v132, %v132
    %v137 = vmul.f32 %v133, 1.6059044e-10
    %v138 = vmul.f32 %v134, 1.6059044e-10
    %v139 = vmul.f32 %v135, 1.6059044e-10
    %v140 = vmul.f32 %v136, 1.6059044e-10
    %v141 = vadd.f32 %v137, -2.5052108e-08
    %v142 = vadd.f32 %v138, -2.5052108e-08
    %v143 = vadd.f32 %v139, -2.5052108e-08
    %v144 = vadd.f32 %v140, -2.5052108e-08
    %v145 = vmul.f32 %v141, %v133
    %v146 = vmul.f32 %v142, %v134
    %v147 = vmul.f32 %v143, %v135
    %v148 = vmul.f32 %v144, %v136
    %v149 = vadd.f32 %v145, 2.7557319e-06
    %v150 = vadd.f32 %v146, 2.7557319e-06
    %v151 = vadd.f32 %v147, 2.7557319e-06
    %v152 = vadd.f32 %v148, 2.7557319e-06
    %v153 = vmul.f32 %v149, %v133
    %v154 = vmul.f32 %v150, %v134
    %v155 = vmul.f32 %v151, %v135
    %v156 = vmul.f32 %v152, %v136
    %v157 = vadd.f32 %v153, -0.0001984127
    %v158 = vadd.f32 %v154, -0.0001984127
    %v159 = vadd.f32 %v155, -0.0001984127
    %v160 = vadd.f32 %v156, -0.0001984127
    %v161 = vmul.f32 %v157, %v133
    %v162 = vmul.f32 %v158, %v134
    %v163 = vmul.f32 %v159, %v135
    %v164 = vmul.f32 %v160, %v136
    %v165 = vadd.f32 %v161, 0.008333334
    %v166 = vadd.f32 %v162, 0.008333334
    %v167 = vadd.f32 %v163, 0.008333334
    %v168 = vadd.f32 %v164, 0.008333334
    %v169 = vmul.f32 %v165, %v133
    %v170 = vmul.f32 %v166, %v134
    %v171 = vmul.f32 %v167, %v135
    %v172 = vmul.f32 %v168, %v136
    %v173 = vadd.f32 %v169, -0.16666667
    %v174 = vadd.f32 %v170, -0.16666667
    %v175 = vadd.f32 %v171, -0.16666667
    %v176 = vadd.f32 %v172, -0.16666667
    %v177 = vmul.f32 %v133, %v173
    %v178 = vmul.f32 %v134, %v174
    %v179 = vmul.f32 %v135, %v175
    %v180 = vmul.f32 %v136, %v176
    %v181 = vmul.f32 %v129, %v177
    %v182 = vmul.f32 %v130, %v178
    %v183 = vmul.f32 %v131, %v179
    %v184 = vmul.f32 %v132, %v180
    %v185 = vadd.f32 %v129, %v181
    %v186 = vadd.f32 %v130, %v182
    %v187 = vadd.f32 %v131, %v183
    %v188 = vadd.f32 %v132, %v184
    %v193 = vcombine.low %v185, %v186
    %v194 = vcombine.low %v187, %v188
    %v196 = vunpack.c.l.s4 1966171168
    %v197 = vunpack.c.0.s8 %v196
    %v198 = vlaneseq
    %v199 = vshrl.u32 %v198, 7
    %v200 = vsub.s32 %v197, %v199
    %v201 = vrot.slane %v193, %v200
    %v203 = vunpack.c.l.s4 1966171168
    %v204 = vunpack.c.0.s8 %v203
    %v205 = vlaneseq
    %v206 = vshrl.u32 %v205, 7
    %v207 = vsub.s32 %v204, %v206
    %v208 = vrot.slane %v194, %v207
    %v209 = vcombine.low %v201, %v208
    %v211 = vunpack.c.l.s4 1966171168
    %v212 = vunpack.c.0.s8 %v211
    %v213 = vlaneseq
    %v214 = vshrl.u32 %v213, 7
    %v215 = vsub.s32 %v212, %v214
    %v216 = vrot.slane %v209, %v215
    %v218 = vlaneseq
    %vm219 = vcmp.ge.s32.totalorder %v218, 0
    %vm220 = vcmp.lt.s32.totalorder %v218, 512
    %vm221 = vmand %vm219, %vm220
    %222 = vst.msk [vmem:[#allocation5] sm:$0xf] %vm221, %v216
    // Predicated region
    $region10: #{tpu_custom_call.1} parent=1 // pred_check
      _
    $region11: #{tpu_custom_call.1} parent=1 // pred_check_branch
      %224 = sbr.rel (0) target = $region13
    $region12: #{tpu_custom_call.1} parent=1 // pred_region
      %s226 = ssub.s32 64, 64
      %227 = vsyncadd [#allocation4], %s226
      %s229 = sshll.u32 [#allocation5], 4
      %s230 = int_to_ptr.vmem [resolvable:$true] %s229
      %232 = dma.vmem_to_hbm [thread:$0]  %s230, 64, %s1, [#allocation4]
    $region13: #{tpu_custom_call.1} parent=1 // pred_fallthru
      _
    // Predicated region
    $region14: #{tpu_custom_call.1} parent=1 // pred_check
      _
    $region15: #{tpu_custom_call.1} parent=1 // pred_check_branch
      %234 = sbr.rel (0) target = $region17
    $region16: #{tpu_custom_call.1} parent=1 // pred_region
      %235 = dma.done [#allocation4], 64
    $region17: #{tpu_custom_call.1} parent=1 // pred_fallthru
      _
    %236 = vsyncpa [#allocation3], 1
    %237 = vsyncpa [#allocation4], 1

</llo_original>
